<compile_context>
chip_gen: v5e
topology: v5e:2x2
jax: 0.10.0
libtpu: 0.0.40
codegen_flags: <defaults>
</compile_context>

<pallas_src>
import functools

import jax
import jax.numpy as jnp
from jax.experimental import pallas as pl
from jax.experimental.pallas import tpu as pltpu


def _round_up(a, b):
    return ((a + b - 1) // b) * b


# ----------------------------------------------------------------------------
# Kernel
# ----------------------------------------------------------------------------
def _marnd_kernel(
    x_ref,      # [TR, D]       f32 (cast to bf16 in-kernel)
    h_ref,      # [TR, H]       f32 (needed exactly for the (1-z)*n + z*h blend)
    w1_ref,     # [D, H]        bf16
    b1_ref,     # [1, H]        f32
    wg_ref,     # [2H, 4H]      bf16  = [(Wir;Whr) | (Wiz;Whz) | (Win;0) | (0;Whn)]
    bg_ref,     # [1, 4H]       f32   = [bir+bhr | biz+bhz | bin | bhn]
    w2_ref,     # [H, QPAD]     bf16  (q_fc2 weight zero-padded on lanes)
    b2_ref,     # [1, QPAD]     f32
    h_out_ref,  # [TR, H]       f32
    q_ref,      # [TR, QPAD]    f32
):
    H = h_ref.shape[-1]
    mm = w1_ref.dtype

    x = x_ref[...].astype(mm)
    h = h_ref[...]

    # --- q_fc1 + ReLU --------------------------------------------------------
    x1 = jnp.dot(x, w1_ref[...], preferred_element_type=jnp.float32) + b1_ref[...]
    x1 = jnp.maximum(x1, 0.0)

    # --- single fused GRU gate matmul (K = 2H, N = 4H) ------------------------
    a = jnp.concatenate([x1.astype(mm), h.astype(mm)], axis=-1)       # [TR, 2H]
    g = jnp.dot(a, wg_ref[...], preferred_element_type=jnp.float32) + bg_ref[...]

    # PyTorch GRUCell:
    #   r  = sigmoid(Wir x + bir + Whr h + bhr)
    #   z  = sigmoid(Wiz x + biz + Whz h + bhz)
    #   n  = tanh(Win x + bin + r * (Whn h + bhn))
    #   h' = (1 - z) * n + z * h
    r = jax.nn.sigmoid(g[:, :H])
    z = jax.nn.sigmoid(g[:, H:2 * H])
    n = jnp.tanh(g[:, 2 * H:3 * H] + r * g[:, 3 * H:])
    h_new = (1.0 - z) * n + z * h
    h_out_ref[...] = h_new

    # --- q_fc2 (lane-padded to 128) -------------------------------------------
    q_ref[...] = jnp.dot(h_new.astype(mm), w2_ref[...],
                         preferred_element_type=jnp.float32) + b2_ref[...]


# ----------------------------------------------------------------------------
# Parameter packing (wrapper-side plumbing, done once).  Returns ARRAYS ONLY
# so the dict can flow through jax.jit as a pytree.
# ----------------------------------------------------------------------------
def pack_params(params, matmul_dtype=jnp.bfloat16):
    H = params["w1"].shape[1]
    n_actions = params["w2"].shape[1]
    qpad = _round_up(n_actions, 128)
    zeros = jnp.zeros((H, H), jnp.float32)

    # W_gates[2H, 4H]: columns [r | z | n_input | n_hidden]
    wg = jnp.concatenate(
        [jnp.concatenate([params["wir"], params["wiz"], params["win"], zeros], axis=1),
         jnp.concatenate([params["whr"], params["whz"], zeros, params["whn"]], axis=1)],
        axis=0)
    bg = jnp.concatenate(
        [params["bir"] + params["bhr"],
         params["biz"] + params["bhz"],
         params["bin"],
         params["bhn"]], axis=1)

    w2p = jnp.pad(params["w2"], ((0, 0), (0, qpad - n_actions)))
    b2p = jnp.pad(params["b2"], ((0, 0), (0, qpad - n_actions)))

    return {
        "w1": params["w1"].astype(matmul_dtype),
        "b1": params["b1"].astype(jnp.float32),
        "wg": wg.astype(matmul_dtype),
        "bg": bg.astype(jnp.float32),
        "w2": w2p.astype(matmul_dtype),
        "b2": b2p.astype(jnp.float32),
    }


# ----------------------------------------------------------------------------
# Wrapper
# ----------------------------------------------------------------------------
@functools.partial(jax.jit, static_argnames=("n_actions", "row_tile"))
def _forward_impl(x, hidden, packed, *, n_actions, row_tile=512):
    H = packed["w1"].shape[1]
    qpad = packed["w2"].shape[1]
    rows, input_dim = x.shape

    x_f = x.astype(jnp.float32) if x.dtype != jnp.float32 else x
    h_in = hidden.reshape(-1, H)
    if h_in.dtype != jnp.float32:
        h_in = h_in.astype(jnp.float32)

    # --- row tiling -----------------------------------------------------------
    # 16-aligned tiles (bf16 sublane packing); tile derived from the actual row
    # count so padding waste is bounded by ~16 rows, and >=2 grid programs when
    # possible so v7x's second TensorCore gets work and the auto-pipeline can
    # overlap DMA with compute.  Harmless on v5e/v6e (single TC).
    rows_a = _round_up(rows, 16)
    n_blocks = pl.cdiv(rows_a, row_tile)
    if rows_a >= 32:
        n_blocks = max(n_blocks, 2)
    tr = _round_up(pl.cdiv(rows_a, n_blocks), 16)
    rows_pad = tr * pl.cdiv(rows_a, tr)
    pad = rows_pad - rows

    if pad:
        x_p = jnp.pad(x_f, ((0, pad), (0, 0)))
        h_p = jnp.pad(h_in, ((0, pad), (0, 0)))
    else:
        x_p, h_p = x_f, h_in

    grid = (rows_pad // tr,)
    row_spec = lambda feat: pl.BlockSpec((tr, feat), lambda i: (i, 0))
    const_spec = lambda r, c: pl.BlockSpec((r, c), lambda i: (0, 0))

    # Advisory cost hint (mem-bound kernel: let XLA overlap neighbors).
    flops = 2 * rows_pad * (input_dim * H + (2 * H) * (4 * H) + H * qpad)
    transcendentals = rows_pad * 3 * H
    bytes_accessed = (rows_pad * 4 * (input_dim + 2 * H + qpad)            # acts
                      + 2 * (input_dim * H + 2 * H * 4 * H + H * qpad)     # bf16 W
                      + 4 * (H + 4 * H + qpad))                            # f32 b

    h_out, q = pl.pallas_call(
        _marnd_kernel,
        out_shape=(jax.ShapeDtypeStruct((rows_pad, H), jnp.float32),
                   jax.ShapeDtypeStruct((rows_pad, qpad), jnp.float32)),
        grid=grid,
        in_specs=[
            row_spec(input_dim),          # x
            row_spec(H),                  # h_in
            const_spec(input_dim, H),     # w1
            const_spec(1, H),             # b1
            const_spec(2 * H, 4 * H),     # wg
            const_spec(1, 4 * H),         # bg
            const_spec(H, qpad),          # w2 (padded)
            const_spec(1, qpad),          # b2 (padded)
        ],
        out_specs=(row_spec(H), row_spec(qpad)),
        compiler_params=pltpu.CompilerParams(
            dimension_semantics=("parallel",),
            vmem_limit_bytes=32 << 20),
        cost_estimate=pl.CostEstimate(flops=flops,
                                      transcendentals=transcendentals,
                                      bytes_accessed=bytes_accessed),
    )(x_p, h_p,
      packed["w1"], packed["b1"],
      packed["wg"], packed["bg"],
      packed["w2"], packed["b2"])

    if pad:
        h_out = h_out[:rows]
        q = q[:rows]
    local_q = q[:, :n_actions][None]     # unsqueeze(0) from the PyTorch code
    return local_q, h_out


def marnd_agent_forward(x, hidden, packed, n_actions, *, row_tile=512):
    """x: [B*A, D], hidden: [B, A, H] -> (q: [1, B*A, n_actions], h_out: [B*A, H])."""
    return _forward_impl(x, hidden, packed, n_actions=n_actions, row_tile=row_tile)


# ----------------------------------------------------------------------------
# Synthetic parameters + pure-JAX reference
# ----------------------------------------------------------------------------
def init_params(key, input_dim, hidden_dim, n_actions):
    """Deterministic synthetic parameters; weights stored as [in, out]."""
    ks = jax.random.split(key, 16)
    s = 0.1

    def mat(k, shape):
        return jax.random.normal(k, shape, jnp.float32) * s

    return {
        "w1": mat(ks[0], (input_dim, hidden_dim)),
        "b1": mat(ks[1], (1, hidden_dim)),
        "wir": mat(ks[2], (hidden_dim, hidden_dim)),
        "wiz": mat(ks[3], (hidden_dim, hidden_dim)),
        "win": mat(ks[4], (hidden_dim, hidden_dim)),
        "bir": mat(ks[5], (1, hidden_dim)),
        "biz": mat(ks[6], (1, hidden_dim)),
        "bin": mat(ks[7], (1, hidden_dim)),
        "whr": mat(ks[8], (hidden_dim, hidden_dim)),
        "whz": mat(ks[9], (hidden_dim, hidden_dim)),
        "whn": mat(ks[10], (hidden_dim, hidden_dim)),
        "bhr": mat(ks[11], (1, hidden_dim)),
        "bhz": mat(ks[12], (1, hidden_dim)),
        "bhn": mat(ks[13], (1, hidden_dim)),
        "w2": mat(ks[14], (hidden_dim, n_actions)),
        "b2": mat(ks[15], (1, n_actions)),
    }


def reference_forward(x, hidden, params):
    """Pure-JAX f32 reference implementing the PyTorch forward exactly."""
    H = params["w1"].shape[1]
    h = hidden.reshape(-1, H)
    x1 = jax.nn.relu(x @ params["w1"] + params["b1"])
    i_r = x1 @ params["wir"] + params["bir"]
    i_z = x1 @ params["wiz"] + params["biz"]
    i_n = x1 @ params["win"] + params["bin"]
    h_r = h @ params["whr"] + params["bhr"]
    h_z = h @ params["whz"] + params["bhz"]
    h_n = h @ params["whn"] + params["bhn"]
    r = jax.nn.sigmoid(i_r + h_r)
    z = jax.nn.sigmoid(i_z + h_z)
    n = jnp.tanh(i_n + r * h_n)
    h_new = (1.0 - z) * n + z * h
    q = (h_new @ params["w2"] + params["b2"])[None]
    return q, h_new


# ----------------------------------------------------------------------------
# Main
# ----------------------------------------------------------------------------
if __name__ == "__main__":
    batch_size = 2
    n_agents = 4
    input_dim = 32      # q_fc1 in_features
    hidden_dim = 32     # args.rnn_hidden_dim
    n_actions = 8       # args.n_actions

    key = jax.random.PRNGKey(0)
    kx, kh, kp = jax.random.split(key, 3)

    x = jax.random.normal(kx, (batch_size * n_agents, input_dim), jnp.float32)
    hidden = jax.random.normal(kh, (batch_size, n_agents, hidden_dim), jnp.float32)
    params = init_params(kp, input_dim, hidden_dim, n_actions)
    packed = pack_params(params)

    local_q, h_out = marnd_agent_forward(x, hidden, packed, n_actions)
    jax.block_until_ready((local_q, h_out))

    assert local_q.shape == (1, batch_size * n_agents, n_actions)
    assert h_out.shape == (batch_size * n_agents, hidden_dim)

    # Correctness vs. f32 reference (bf16 matmul inputs -> loose tolerance).
    q_ref, h_ref = reference_forward(x, hidden, params)
    assert jnp.allclose(local_q, q_ref, atol=5e-2, rtol=5e-2), "q mismatch"
    assert jnp.allclose(h_out, h_ref, atol=5e-2, rtol=5e-2), "h_out mismatch"

    print("KERNEL_OK")
</pallas_src>

<mosaic_0001>
module attributes {stable_mosaic.version = 11 : i64} {
  func.func @_marnd_kernel(%arg0: i32, %arg1: memref<16x32xf32, #tpu.memory_space<vmem>>, %arg2: memref<16x32xf32, #tpu.memory_space<vmem>>, %arg3: memref<32x32xbf16, #tpu.memory_space<vmem>>, %arg4: memref<1x32xf32, #tpu.memory_space<vmem>>, %arg5: memref<64x128xbf16, #tpu.memory_space<vmem>>, %arg6: memref<1x128xf32, #tpu.memory_space<vmem>>, %arg7: memref<32x128xbf16, #tpu.memory_space<vmem>>, %arg8: memref<1x128xf32, #tpu.memory_space<vmem>>, %arg9: memref<16x32xf32, #tpu.memory_space<vmem>>, %arg10: memref<16x128xf32, #tpu.memory_space<vmem>>) attributes {dimension_semantics = [#tpu.dimension_semantics<parallel>], iteration_bounds = array<i64: 1>, scalar_prefetch = 0 : i64, scratch_operands = 0 : i64, tpu.core_type = #tpu.core_type<tc>, window_params = [{transform_indices = @transform_0, window_bounds = array<i64: 16, 32>}, {transform_indices = @transform_1, window_bounds = array<i64: 16, 32>}, {pipeline_mode = #tpu.pipeline_mode<synchronous>, transform_indices = @transform_2, window_bounds = array<i64: 32, 32>}, {pipeline_mode = #tpu.pipeline_mode<synchronous>, transform_indices = @transform_3, window_bounds = array<i64: 1, 32>}, {pipeline_mode = #tpu.pipeline_mode<synchronous>, transform_indices = @transform_4, window_bounds = array<i64: 64, 128>}, {pipeline_mode = #tpu.pipeline_mode<synchronous>, transform_indices = @transform_5, window_bounds = array<i64: 1, 128>}, {pipeline_mode = #tpu.pipeline_mode<synchronous>, transform_indices = @transform_6, window_bounds = array<i64: 32, 128>}, {pipeline_mode = #tpu.pipeline_mode<synchronous>, transform_indices = @transform_7, window_bounds = array<i64: 1, 128>}, {transform_indices = @transform_8, window_bounds = array<i64: 16, 32>}, {transform_indices = @transform_9, window_bounds = array<i64: 16, 128>}]} {
    %c0 = arith.constant 0 : index
    %c0_0 = arith.constant 0 : index
    %0 = vector.load %arg1[%c0, %c0_0] : memref<16x32xf32, #tpu.memory_space<vmem>>, vector<16x32xf32>
    %1 = arith.truncf %0 : vector<16x32xf32> to vector<16x32xbf16>
    %c0_1 = arith.constant 0 : index
    %c0_2 = arith.constant 0 : index
    %2 = vector.load %arg2[%c0_1, %c0_2] : memref<16x32xf32, #tpu.memory_space<vmem>>, vector<16x32xf32>
    %c0_3 = arith.constant 0 : index
    %c0_4 = arith.constant 0 : index
    %3 = vector.load %arg3[%c0_3, %c0_4] : memref<32x32xbf16, #tpu.memory_space<vmem>>, vector<32x32xbf16>
    %cst = arith.constant dense<0.000000e+00> : vector<16x32xf32>
    %4 = tpu.matmul %1, %3, %cst {dimension_numbers = #tpu.dot_dimension_numbers<[1], [0], [0], [1], [0, 0, 1, 1], [], []>} : vector<16x32xbf16>, vector<32x32xbf16>, vector<16x32xf32> -> vector<16x32xf32>
    %c0_5 = arith.constant 0 : index
    %c0_6 = arith.constant 0 : index
    %5 = vector.load %arg4[%c0_5, %c0_6] : memref<1x32xf32, #tpu.memory_space<vmem>>, vector<1x32xf32>
    %6 = vector.broadcast %5 : vector<1x32xf32> to vector<16x32xf32>
    %7 = arith.addf %4, %6 : vector<16x32xf32>
    %cst_7 = arith.constant 0.000000e+00 : f32
    %8 = vector.broadcast %cst_7 : f32 to vector<16x32xf32>
    %9 = arith.maximumf %7, %8 : vector<16x32xf32>
    %10 = arith.truncf %9 : vector<16x32xf32> to vector<16x32xbf16>
    %11 = arith.truncf %2 : vector<16x32xf32> to vector<16x32xbf16>
    %12 = tpu.concatenate %10, %11 in 1 : vector<16x32xbf16>, vector<16x32xbf16> -> vector<16x64xbf16>
    %c0_8 = arith.constant 0 : index
    %c0_9 = arith.constant 0 : index
    %13 = vector.load %arg5[%c0_8, %c0_9] : memref<64x128xbf16, #tpu.memory_space<vmem>>, vector<64x128xbf16>
    %cst_10 = arith.constant dense<0.000000e+00> : vector<16x128xf32>
    %14 = tpu.matmul %12, %13, %cst_10 {dimension_numbers = #tpu.dot_dimension_numbers<[1], [0], [0], [1], [0, 0, 1, 1], [], []>} : vector<16x64xbf16>, vector<64x128xbf16>, vector<16x128xf32> -> vector<16x128xf32>
    %c0_11 = arith.constant 0 : index
    %c0_12 = arith.constant 0 : index
    %15 = vector.load %arg6[%c0_11, %c0_12] : memref<1x128xf32, #tpu.memory_space<vmem>>, vector<1x128xf32>
    %16 = vector.broadcast %15 : vector<1x128xf32> to vector<16x128xf32>
    %17 = arith.addf %14, %16 : vector<16x128xf32>
    %18 = vector.extract_strided_slice %17 {offsets = [0, 0], sizes = [16, 32], strides = [1, 1]} : vector<16x128xf32> to vector<16x32xf32>
    %19 = arith.negf %18 : vector<16x32xf32>
    %20 = math.exp %19 : vector<16x32xf32>
    %cst_13 = arith.constant 1.000000e+00 : f32
    %21 = vector.broadcast %cst_13 : f32 to vector<16x32xf32>
    %22 = arith.addf %21, %20 : vector<16x32xf32>
    %23 = arith.divf %21, %22 : vector<16x32xf32>
    %24 = vector.extract_strided_slice %17 {offsets = [0, 32], sizes = [16, 32], strides = [1, 1]} : vector<16x128xf32> to vector<16x32xf32>
    %25 = arith.negf %24 : vector<16x32xf32>
    %26 = math.exp %25 : vector<16x32xf32>
    %cst_14 = arith.constant 1.000000e+00 : f32
    %27 = vector.broadcast %cst_14 : f32 to vector<16x32xf32>
    %28 = arith.addf %27, %26 : vector<16x32xf32>
    %29 = arith.divf %27, %28 : vector<16x32xf32>
    %30 = vector.extract_strided_slice %17 {offsets = [0, 64], sizes = [16, 32], strides = [1, 1]} : vector<16x128xf32> to vector<16x32xf32>
    %31 = vector.extract_strided_slice %17 {offsets = [0, 96], sizes = [16, 32], strides = [1, 1]} : vector<16x128xf32> to vector<16x32xf32>
    %32 = arith.mulf %23, %31 : vector<16x32xf32>
    %33 = arith.addf %30, %32 : vector<16x32xf32>
    %34 = math.tanh %33 : vector<16x32xf32>
    %cst_15 = arith.constant 1.000000e+00 : f32
    %35 = vector.broadcast %cst_15 : f32 to vector<16x32xf32>
    %36 = arith.subf %35, %29 : vector<16x32xf32>
    %37 = arith.mulf %36, %34 : vector<16x32xf32>
    %38 = arith.mulf %29, %2 : vector<16x32xf32>
    %39 = arith.addf %37, %38 : vector<16x32xf32>
    %c0_16 = arith.constant 0 : index
    %c0_17 = arith.constant 0 : index
    %40 = vector.load %arg9[%c0_16, %c0_17] : memref<16x32xf32, #tpu.memory_space<vmem>>, vector<16x32xf32>
    tpu.vector_store %arg9[%c0_16, %c0_17], %39 {strides = array<i32>} : memref<16x32xf32, #tpu.memory_space<vmem>>, vector<16x32xf32>,
    %41 = arith.truncf %39 : vector<16x32xf32> to vector<16x32xbf16>
    %c0_18 = arith.constant 0 : index
    %c0_19 = arith.constant 0 : index
    %42 = vector.load %arg7[%c0_18, %c0_19] : memref<32x128xbf16, #tpu.memory_space<vmem>>, vector<32x128xbf16>
    %cst_20 = arith.constant dense<0.000000e+00> : vector<16x128xf32>
    %43 = tpu.matmul %41, %42, %cst_20 {dimension_numbers = #tpu.dot_dimension_numbers<[1], [0], [0], [1], [0, 0, 1, 1], [], []>} : vector<16x32xbf16>, vector<32x128xbf16>, vector<16x128xf32> -> vector<16x128xf32>
    %c0_21 = arith.constant 0 : index
    %c0_22 = arith.constant 0 : index
    %44 = vector.load %arg8[%c0_21, %c0_22] : memref<1x128xf32, #tpu.memory_space<vmem>>, vector<1x128xf32>
    %45 = vector.broadcast %44 : vector<1x128xf32> to vector<16x128xf32>
    %46 = arith.addf %43, %45 : vector<16x128xf32>
    %c0_23 = arith.constant 0 : index
    %c0_24 = arith.constant 0 : index
    %47 = vector.load %arg10[%c0_23, %c0_24] : memref<16x128xf32, #tpu.memory_space<vmem>>, vector<16x128xf32>
    tpu.vector_store %arg10[%c0_23, %c0_24], %46 {strides = array<i32>} : memref<16x128xf32, #tpu.memory_space<vmem>>, vector<16x128xf32>,
    return
  }
  func.func @transform_0(%arg0: i32) -> (i32, i32) {
    %c0_i32 = arith.constant 0 : i32
    %c0_i32_0 = arith.constant 0 : i32
    return %arg0, %c0_i32 : i32, i32
  }
  func.func @transform_1(%arg0: i32) -> (i32, i32) {
    %c0_i32 = arith.constant 0 : i32
    %c0_i32_0 = arith.constant 0 : i32
    return %arg0, %c0_i32 : i32, i32
  }
  func.func @transform_2(%arg0: i32) -> (i32, i32) {
    %c0_i32 = arith.constant 0 : i32
    %c0_i32_0 = arith.constant 0 : i32
    %c0_i32_1 = arith.constant 0 : i32
    return %c0_i32, %c0_i32_0 : i32, i32
  }
  func.func @transform_3(%arg0: i32) -> (i32, i32) {
    %c0_i32 = arith.constant 0 : i32
    %c0_i32_0 = arith.constant 0 : i32
    %c0_i32_1 = arith.constant 0 : i32
    return %c0_i32, %c0_i32_0 : i32, i32
  }
  func.func @transform_4(%arg0: i32) -> (i32, i32) {
    %c0_i32 = arith.constant 0 : i32
    %c0_i32_0 = arith.constant 0 : i32
    %c0_i32_1 = arith.constant 0 : i32
    return %c0_i32, %c0_i32_0 : i32, i32
  }
  func.func @transform_5(%arg0: i32) -> (i32, i32) {
    %c0_i32 = arith.constant 0 : i32
    %c0_i32_0 = arith.constant 0 : i32
    %c0_i32_1 = arith.constant 0 : i32
    return %c0_i32, %c0_i32_0 : i32, i32
  }
  func.func @transform_6(%arg0: i32) -> (i32, i32) {
    %c0_i32 = arith.constant 0 : i32
    %c0_i32_0 = arith.constant 0 : i32
    %c0_i32_1 = arith.constant 0 : i32
    return %c0_i32, %c0_i32_0 : i32, i32
  }
  func.func @transform_7(%arg0: i32) -> (i32, i32) {
    %c0_i32 = arith.constant 0 : i32
    %c0_i32_0 = arith.constant 0 : i32
    %c0_i32_1 = arith.constant 0 : i32
    return %c0_i32, %c0_i32_0 : i32, i32
  }
  func.func @transform_8(%arg0: i32) -> (i32, i32) {
    %c0_i32 = arith.constant 0 : i32
    %c0_i32_0 = arith.constant 0 : i32
    return %arg0, %c0_i32 : i32, i32
  }
  func.func @transform_9(%arg0: i32) -> (i32, i32) {
    %c0_i32 = arith.constant 0 : i32
    %c0_i32_0 = arith.constant 0 : i32
    return %arg0, %c0_i32 : i32, i32
  }
}

</mosaic_0001>

<llo_original>
// kernel: _forward_impl.1
$region0: #{_forward_impl.1}
  #allocation0 [shape = 'u32[]', space=smem, size = 0x4, offset = 0x4, fixed_abs, tag = 'smem constant byte address 0x4 - core index']
  #allocation1 [shape = 'u32[72,128]{1,0:T(1,128)}', space=vmem, size = 0x9000, scoped, tag = 'internal scratch']
  %s0 = inlined_call_operand.vmem [shape: f32[16,32], index: 0, kind: input, shape index: {}]
  %s1 = inlined_call_operand.vmem [shape: f32[16,32], index: 1, kind: input, shape index: {}]
  %s2 = inlined_call_operand.vmem [shape: bf16[32,32], index: 2, kind: input, shape index: {}]
  %s3 = inlined_call_operand.vmem [shape: f32[1,32], index: 3, kind: input, shape index: {}]
  %s4 = inlined_call_operand.vmem [shape: bf16[64,128], index: 4, kind: input, shape index: {}]
  %s5 = inlined_call_operand.vmem [shape: f32[1,128], index: 5, kind: input, shape index: {}]
  %s6 = inlined_call_operand.hbm [shape: bf16[32,128], index: 6, kind: input, shape index: {}]
  %s7 = inlined_call_operand.vmem [shape: f32[1,128], index: 7, kind: input, shape index: {}]
  %s8 = inlined_call_operand.vmem [shape: f32[16,32], index: 8, kind: output, shape index: {0}]
  %s9 = inlined_call_operand.vmem [shape: f32[16,128], index: 9, kind: output, shape index: {1}]
  %10 = xla_tuple %s8, %s9
  %s11 = sld [smem:[#allocation0]]
  $region54: #{_forward_impl.1} parent=0
    _
  %s13 = ssub.s32 1, %s11
  %s14 = scalar_select 0, %s13, %s11
  $region1: #{_forward_impl.1} parent=0
    #allocation2 [shape = 'u8[8192]{0}', space=vmem, size = 0x2000, scoped, tag = 'input window, operand 6, single buffered']
    #allocation3 [shape = 's32[1]{0}', space=sflag, size = 0x4, scoped, tag = 'scoped memory for _forward_impl.1']
    %15 = vsyncpa [#allocation3], 0
    // Predicated region
    $region2: #{_forward_impl.1} parent=1 // pred_check
      _
    $region3: #{_forward_impl.1} parent=1 // pred_check_branch
      %17 = sbr.rel (0) target = $region5
    $region4: #{_forward_impl.1} parent=1 // pred_region
      _
    $region5: #{_forward_impl.1} parent=1 // pred_fallthru
      _
    // Predicated region
    $region6: #{_forward_impl.1} parent=1 // pred_check
      _
    $region7: #{_forward_impl.1} parent=1 // pred_check_branch
      %19 = sbr.rel (0) target = $region9
    $region8: #{_forward_impl.1} parent=1 // pred_region
      _
    $region9: #{_forward_impl.1} parent=1 // pred_fallthru
      _
    // Predicated region
    $region10: #{_forward_impl.1} parent=1 // pred_check
      _
    $region11: #{_forward_impl.1} parent=1 // pred_check_branch
      %21 = sbr.rel (0) target = $region13
    $region12: #{_forward_impl.1} parent=1 // pred_region
      _
    $region13: #{_forward_impl.1} parent=1 // pred_fallthru
      _
    // Predicated region
    $region14: #{_forward_impl.1} parent=1 // pred_check
      _
    $region15: #{_forward_impl.1} parent=1 // pred_check_branch
      %23 = sbr.rel (0) target = $region17
    $region16: #{_forward_impl.1} parent=1 // pred_region
      _
    $region17: #{_forward_impl.1} parent=1 // pred_fallthru
      _
    // Predicated region
    $region18: #{_forward_impl.1} parent=1 // pred_check
      _
    $region19: #{_forward_impl.1} parent=1 // pred_check_branch
      %25 = sbr.rel (0) target = $region21
    $region20: #{_forward_impl.1} parent=1 // pred_region
      _
    $region21: #{_forward_impl.1} parent=1 // pred_fallthru
      _
    // Predicated region
    $region22: #{_forward_impl.1} parent=1 // pred_check
      _
    $region23: #{_forward_impl.1} parent=1 // pred_check_branch
      %27 = sbr.rel (0) target = $region25
    $region24: #{_forward_impl.1} parent=1 // pred_region
      _
    $region25: #{_forward_impl.1} parent=1 // pred_fallthru
      _
    // Predicated region
    $region26: #{_forward_impl.1} parent=1 // pred_check
      _
    $region27: #{_forward_impl.1} parent=1 // pred_check_branch
      %29 = sbr.rel (0) target = $region29
    $region28: #{_forward_impl.1} parent=1 // pred_region
      %31 = vsyncadd [#allocation3], 0
      %s32 = sshll.u32 %s6, 4
      %s33 = int_to_ptr.hbm [resolvable:$true] %s32
      %s34 = sshll.u32 [#allocation2], 4
      %s35 = int_to_ptr.vmem [resolvable:$true] %s34
      %40 = dma.hbm_to_vmem [thread:$0]  %s33, 256, %s35, [#allocation3], 64, 64, 4
    $region29: #{_forward_impl.1} parent=1 // pred_fallthru
      _
    // Predicated region
    $region30: #{_forward_impl.1} parent=1 // pred_check
      _
    $region31: #{_forward_impl.1} parent=1 // pred_check_branch
      %42 = sbr.rel (0) target = $region33
    $region32: #{_forward_impl.1} parent=1 // pred_region
      _
    $region33: #{_forward_impl.1} parent=1 // pred_fallthru
      _
    // Predicated region
    $region34: #{_forward_impl.1} parent=1 // pred_check
      _
    $region35: #{_forward_impl.1} parent=1 // pred_check_branch
      %44 = sbr.rel (0) target = $region37
    $region36: #{_forward_impl.1} parent=1 // pred_region
      %46 = dma.done [#allocation3], 256
    $region37: #{_forward_impl.1} parent=1 // pred_fallthru
      _
    %v48 = vld [vmem:[%s0] sm:$0xff]
    %v49 = vld [vmem:[%s0 + $0x8] sm:$0xff]
    %v50 = vpack.c.bf16 %v49, %v48
    %v51 = vld [vmem:[%s1] sm:$0xff]
    %v52 = vld [vmem:[%s1 + $0x8] sm:$0xff]
    %v53 = vld [vmem:[%s2] sm:$0xf]
    %v54 = vld [vmem:[%s2 + $0x4] sm:$0xf]
    %v55 = vld [vmem:[%s2 + $0x8] sm:$0xf]
    %v56 = vld [vmem:[%s2 + $0xc] sm:$0xf]
    %v57 = vld [vmem:[%s3] sm:$0x1]
    %v59 = vperm.slane %v57, 0
    %v65 = vunpack.c.l.b16 %v53
    %v66 = vunpack.c.l.b16 %v54
    %v67 = vunpack.c.l.b16 %v55
    %v68 = vunpack.c.l.b16 %v56
    %v69 = vpack.c.b16 %v66, %v65
    %v70 = vpack.c.b16 %v68, %v67
    %vm73 = vcmask 261120
    %v75 = vsel %vm73, %v50, 0
    %77 = vmatpush.bf16.msra.mxu0 0
    %78 = vmatpush.bf16.msra.mxu0 0
    %79 = vmatpush.bf16.msra.mxu0 0
    %80 = vmatpush.bf16.msra.mxu0 0
    %81 = vmatpush.bf16.msra.mxu0 0
    %82 = vmatpush.bf16.msra.mxu0 0
    %83 = vmatpush.bf16.msra.mxu0 %v70
    %84 = vmatpush.bf16.msra.mxu0 %v69
    %85 = vmatmul.bf16.gmra.mxu0 %v75
    %v86 = vpop.f32.mrf.mxu0
    %v87 = vadd.f32 %v59, %v86
    %v88 = vpop.f32.mrf.mxu0
    %v89 = vadd.f32 %v59, %v88
    %90 = vdwg.mxu0
    %v91 = vmax.f32 %v87, 0.0
    %v92 = vmax.f32 %v89, 0.0
    %v93 = vpack.c.bf16 %v91, %v91
    %v94 = vpack.c.bf16 %v92, %v92
    %v95 = vpack.c.bf16 %v51, %v51
    %v96 = vpack.c.bf16 %v52, %v52
    %v99 = vunpack.c.l.b16 %v93
    %v100 = vunpack.c.l.b16 %v94
    %v101 = vpack.c.b16 %v100, %v99
    %v104 = vunpack.c.l.b16 %v95
    %v105 = vunpack.c.l.b16 %v96
    %v106 = vpack.c.b16 %v105, %v104
    %107 = vrot.lane.b32.xlu0 %v106, 32
    %v108 = vpop.permute.xlu0 %107
    %v111 = vsel %vm73, %v101, %v108
    %v112 = vld [vmem:[%s4] sm:$0xf]
    %v113 = vld [vmem:[%s4 + $0x4] sm:$0xf]
    %v114 = vld [vmem:[%s4 + $0x8] sm:$0xf]
    %v115 = vld [vmem:[%s4 + $0xc] sm:$0xf]
    %v116 = vld [vmem:[%s4 + $0x10] sm:$0xf]
    %v117 = vld [vmem:[%s4 + $0x14] sm:$0xf]
    %v118 = vld [vmem:[%s4 + $0x18] sm:$0xf]
    %v119 = vld [vmem:[%s4 + $0x1c] sm:$0xf]
    %v120 = vld [vmem:[%s5] sm:$0x1]
    %v122 = vperm.slane %v120, 0
    %v132 = vunpack.c.l.b16 %v112
    %v133 = vunpack.c.l.b16 %v113
    %v134 = vunpack.c.l.b16 %v114
    %v135 = vunpack.c.l.b16 %v115
    %v136 = vunpack.c.l.b16 %v116
    %v137 = vunpack.c.l.b16 %v117
    %v138 = vunpack.c.l.b16 %v118
    %v139 = vunpack.c.l.b16 %v119
    %v140 = vpack.c.b16 %v133, %v132
    %v141 = vpack.c.b16 %v135, %v134
    %v142 = vpack.c.b16 %v137, %v136
    %v143 = vpack.c.b16 %v139, %v138
    %vm148 = vcmask 523264
    %v149 = vsel %vm148, %v111, 0
    %151 = vmatpush.bf16.msra.mxu0 0
    %152 = vmatpush.bf16.msra.mxu0 0
    %153 = vmatpush.bf16.msra.mxu0 0
    %154 = vmatpush.bf16.msra.mxu0 0
    %155 = vmatpush.bf16.msra.mxu0 %v143
    %156 = vmatpush.bf16.msra.mxu0 %v142
    %157 = vmatpush.bf16.msra.mxu0 %v141
    %158 = vmatpush.bf16.msra.mxu0 %v140
    %159 = vmatmul.bf16.gmra.mxu0 %v149
    %v160 = vpop.f32.mrf.mxu0
    %v161 = vadd.f32 %v122, %v160
    %v162 = vpop.f32.mrf.mxu0
    %v163 = vadd.f32 %v122, %v162
    %164 = vdwg.mxu0
    %v165 = vxor.u32 %v161, 2147483648
    %v166 = vxor.u32 %v163, 2147483648
    %v167 = vmul.f32 %v165, 1.442695
    %v168 = vpow.pop %v167
    %v169 = vmul.f32 %v166, 1.442695
    %v170 = vpow.pop %v169
    %v171 = vadd.f32 %v168, 1.0
    %v172 = vadd.f32 %v170, 1.0
    %v173 = vrcp.pop %v171
    %v174 = vmul.f32 %v171, %v173
    %v175 = vsub.f32 1.0, %v174
    %v176 = vmul.f32 %v173, %v175
    %v177 = vadd.f32 %v173, %v176
    %vm178 = vweird.f32 %v171
    %vm179 = vweird.f32 %v173
    %vm180 = vmor %vm178, %vm179
    %v181 = vsel %vm180, %v173, %v177
    %v182 = vand.u32 2147483647, %v171
    %vm183 = vcmp.eq.f32.partialorder %v182, 8.507059e+37
    %v184 = vand.u32 %v171, 2147483648
    %v185 = vor.u32 1.1754944e-38, %v184
    %v186 = vsel %vm183, %v185, %v181
    %v187 = vmul.f32 1.0, %v186
    %v188 = vrcp.pop %v172
    %v189 = vmul.f32 %v172, %v188
    %v190 = vsub.f32 1.0, %v189
    %v191 = vmul.f32 %v188, %v190
    %v192 = vadd.f32 %v188, %v191
    %vm193 = vweird.f32 %v172
    %vm194 = vweird.f32 %v188
    %vm195 = vmor %vm193, %vm194
    %v196 = vsel %vm195, %v188, %v192
    %v197 = vand.u32 2147483647, %v172
    %vm198 = vcmp.eq.f32.partialorder %v197, 8.507059e+37
    %v199 = vand.u32 %v172, 2147483648
    %v200 = vor.u32 1.1754944e-38, %v199
    %v201 = vsel %vm198, %v200, %v196
    %v202 = vmul.f32 1.0, %v201
    %205 = vrot.lane.b32.xlu0 %v161, 32
    %v206 = vpop.permute.xlu0 %205
    %207 = vrot.lane.b32.xlu0 %v163, 32
    %v208 = vpop.permute.xlu0 %207
    %v211 = vmul.f32 %v187, %v206
    %v212 = vmul.f32 %v202, %v208
    %215 = vrot.lane.b32.xlu0 %v211, 64
    %v216 = vpop.permute.xlu0 %215
    %217 = vrot.lane.b32.xlu0 %v212, 64
    %v218 = vpop.permute.xlu0 %217
    %v221 = vadd.f32 %v161, %v216
    %v222 = vadd.f32 %v163, %v218
    %v223 = vtanh.pop %v221
    %v224 = vtanh.pop %v222
    %v225 = vsub.f32 1.0, %v187
    %v226 = vsub.f32 1.0, %v202
    %229 = vrot.lane.b32.xlu0 %v223, 96
    %v230 = vpop.permute.xlu0 %229
    %231 = vrot.lane.b32.xlu0 %v224, 96
    %v232 = vpop.permute.xlu0 %231
    %v235 = vmul.f32 %v225, %v230
    %v236 = vmul.f32 %v226, %v232
    %239 = vrot.lane.b32.xlu0 %v51, 32
    %v240 = vpop.permute.xlu0 %239
    %241 = vrot.lane.b32.xlu0 %v52, 32
    %v242 = vpop.permute.xlu0 %241
    %v245 = vmul.f32 %v187, %v240
    %v246 = vmul.f32 %v202, %v242
    %v247 = vadd.f32 %v235, %v245
    %v248 = vadd.f32 %v236, %v246
    %251 = vrot.lane.b32.xlu0 %v247, 96
    %v252 = vpop.permute.xlu0 %251
    %253 = vrot.lane.b32.xlu0 %v248, 96
    %v254 = vpop.permute.xlu0 %253
    %257 = vst.msk [vmem:[%s8] sm:$0xff] %vm73, %v252
    %258 = vst.msk [vmem:[%s8 + $0x8] sm:$0xff] %vm73, %v254
    %v259 = vpack.c.bf16 %v248, %v247
    %v260 = vld [vmem:[#allocation2] sm:$0xf]
    %v261 = vld [vmem:[#allocation2 + $0x4] sm:$0xf]
    %v262 = vld [vmem:[#allocation2 + $0x8] sm:$0xf]
    %v263 = vld [vmem:[#allocation2 + $0xc] sm:$0xf]
    %v264 = vld [vmem:[%s7] sm:$0x1]
    %v266 = vperm.slane %v264, 0
    %269 = vrot.lane.b32.xlu0 %v259, 96
    %v270 = vpop.permute.xlu0 %269
    %v275 = vunpack.c.l.b16 %v260
    %v276 = vunpack.c.l.b16 %v261
    %v277 = vunpack.c.l.b16 %v262
    %v278 = vunpack.c.l.b16 %v263
    %v279 = vpack.c.b16 %v276, %v275
    %v280 = vpack.c.b16 %v278, %v277
    %v284 = vsel %vm73, %v270, 0
    %286 = vmatpush.bf16.msra.mxu0 0
    %287 = vmatpush.bf16.msra.mxu0 0
    %288 = vmatpush.bf16.msra.mxu0 0
    %289 = vmatpush.bf16.msra.mxu0 0
    %290 = vmatpush.bf16.msra.mxu0 0
    %291 = vmatpush.bf16.msra.mxu0 0
    %292 = vmatpush.bf16.msra.mxu0 %v280
    %293 = vmatpush.bf16.msra.mxu0 %v279
    %294 = vmatmul.bf16.gmra.mxu0 %v284
    %v295 = vpop.f32.mrf.mxu0
    %v296 = vadd.f32 %v266, %v295
    %v297 = vpop.f32.mrf.mxu0
    %v298 = vadd.f32 %v266, %v297
    %299 = vdwg.mxu0
    %300 = vst [vmem:[%s9] sm:$0xff] %v296
    %301 = vst [vmem:[%s9 + $0x8] sm:$0xff] %v298
    // Predicated region
    $region38: #{_forward_impl.1} parent=1 // pred_check
      _
    $region39: #{_forward_impl.1} parent=1 // pred_check_branch
      %303 = sbr.rel (0) target = $region41
    $region40: #{_forward_impl.1} parent=1 // pred_region
      _
    $region41: #{_forward_impl.1} parent=1 // pred_fallthru
      _
    // Predicated region
    $region42: #{_forward_impl.1} parent=1 // pred_check
      _
    $region43: #{_forward_impl.1} parent=1 // pred_check_branch
      %305 = sbr.rel (0) target = $region45
    $region44: #{_forward_impl.1} parent=1 // pred_region
      _
    $region45: #{_forward_impl.1} parent=1 // pred_fallthru
      _
    // Predicated region
    $region46: #{_forward_impl.1} parent=1 // pred_check
      _
    $region47: #{_forward_impl.1} parent=1 // pred_check_branch
      %307 = sbr.rel (0) target = $region49
    $region48: #{_forward_impl.1} parent=1 // pred_region
      _
    $region49: #{_forward_impl.1} parent=1 // pred_fallthru
      _
    // Predicated region
    $region50: #{_forward_impl.1} parent=1 // pred_check
      _
    $region51: #{_forward_impl.1} parent=1 // pred_check_branch
      %309 = sbr.rel (0) target = $region53
    $region52: #{_forward_impl.1} parent=1 // pred_region
      _
    $region53: #{_forward_impl.1} parent=1 // pred_fallthru
      _
    %310 = vsyncpa [#allocation3], 1

</llo_original>
